<compile_context>
chip_gen: v7x
topology: tpu7x:2x2x1
jax: 0.10.0
libtpu: 0.0.40
codegen_flags: <defaults>
</compile_context>

<pallas_src>
import functools

import jax
import jax.numpy as jnp
from jax import lax
from jax.experimental import pallas as pl
from jax.experimental.pallas import tpu as pltpu

VOCAB = 100
VOCAB_PAD = 128   # pad the gather/K dimension to one full 128-lane vreg
DIM = 128


def _round_up(x, m):
    return ((x + m - 1) // m) * m


def emb_kernel(idx_ref, table_ref, out_ref):
    # idx_ref:   (num_tiles, TB)   int32  VMEM, resident (constant index_map)
    # table_ref: (VOCAB_PAD, DIM)  f32    VMEM, resident (constant index_map)
    # out_ref:   (TB, DIM)         f32    VMEM tile of the output
    i = pl.program_id(0)
    tb = out_ref.shape[0]

    idx = idx_ref[pl.ds(i, 1), :]                                # (1, TB), lane-resident
    row_ids = lax.broadcasted_iota(jnp.int32, (VOCAB_PAD, tb), 0)
    onehot_t = (row_ids == idx).astype(table_ref.dtype)          # (VOCAB_PAD, TB)

    # out[j, d] = sum_r onehot_t[r, j] * table[r, d] = table[idx[j], d]
    out_ref[...] = lax.dot_general(
        onehot_t, table_ref[...],
        dimension_numbers=(((0,), (0,)), ((), ())),              # trans_a matmul
        preferred_element_type=jnp.float32,
    ).astype(out_ref.dtype)


def pad_embedding_table(table):
    """Zero-pad the (VOCAB, DIM) table to (VOCAB_PAD, DIM). Call once at init."""
    pad = jnp.zeros((VOCAB_PAD, DIM), dtype=table.dtype)
    return pad.at[: table.shape[0], :].set(table)


def _tiling(B, tb):
    """Pick (num_tiles, tb_eff): balanced tiles, <= tb, multiple of 8 rows."""
    B8 = _round_up(max(B, 1), 8)
    nt = max(1, pl.cdiv(B8, tb))
    # Use >= 2 grid steps for mid/large batches so v7x megacore shards the work
    # across both TensorCores and awkward B avoids an output pad + slice copy.
    if nt == 1 and B8 >= 64:
        nt = 2
    tb_eff = _round_up(pl.cdiv(B8, nt), 8)
    num_tiles = pl.cdiv(B8, tb_eff)      # guarantees every tile overlaps the array
    return num_tiles, tb_eff


@functools.partial(jax.jit, static_argnames=("tb",))
def emb_forward(x, table_pad, *, tb=2048):
    """x: (B,) or (B, 1) integer indices; table_pad: (VOCAB_PAD, DIM) f32.

    Returns (B, DIM) float32 — equivalent to encoder(x).squeeze(1).
    """
    B = x.shape[0]
    idx = x.reshape(B).astype(jnp.int32)

    num_tiles, tb_eff = _tiling(B, tb)
    B_pad = num_tiles * tb_eff
    if B_pad != B:
        idx = jnp.pad(idx, (0, B_pad - B))           # pad with index 0; rows dropped
    idx2d = idx.reshape(num_tiles, tb_eff)           # lane-dense index layout

    # Emit exactly (B, DIM) when every block fits (partial last tile: OOB rows
    # are dropped by Pallas -> no out[:B] copy).  Tiny B (< one 8-row tile)
    # falls back to a negligible pad + slice.
    out_rows = B if tb_eff <= B else B_pad

    cost = pl.CostEstimate(
        flops=2 * B_pad * VOCAB_PAD * DIM,
        transcendentals=0,
        bytes_accessed=B_pad * 4 + VOCAB_PAD * DIM * 4 + B * DIM * 4,
    )

    out = pl.pallas_call(
        emb_kernel,
        out_shape=jax.ShapeDtypeStruct((out_rows, DIM), table_pad.dtype),
        grid_spec=pltpu.PrefetchScalarGridSpec(
            num_scalar_prefetch=0,
            grid=(num_tiles,),
            in_specs=[
                # Whole index array resident in VMEM (B_pad*4 bytes, tiny):
                # one contiguous DMA, never re-fetched across grid steps.
                pl.BlockSpec((num_tiles, tb_eff), lambda i: (0, 0)),
                # Full padded table resident in VMEM (64 KiB), never re-fetched.
                pl.BlockSpec((VOCAB_PAD, DIM), lambda i: (0, 0)),
            ],
            out_specs=pl.BlockSpec((tb_eff, DIM), lambda i: (i, 0)),  # lane-dense
        ),
        compiler_params=pltpu.CompilerParams(
            dimension_semantics=("parallel",),
        ),
        cost_estimate=cost,
    )(idx2d, table_pad)

    return out[:B] if out_rows != B else out


if __name__ == "__main__":
    key = jax.random.PRNGKey(0)
    k_w, k_x = jax.random.split(key)

    # nn.Embedding(100, 128) default init: weights ~ N(0, 1).
    table = jax.random.normal(k_w, (VOCAB, DIM), dtype=jnp.float32)
    table_pad = pad_embedding_table(table)   # hoisted out of the forward (done once)

    # Module's forward: x is (B, 1) -> embedding -> squeeze(dim=1) -> (B, DIM).
    B = 8
    x = jax.random.randint(k_x, (B, 1), 0, VOCAB, dtype=jnp.int32)
    out = jax.block_until_ready(emb_forward(x, table_pad))
    ref = jnp.take(table, x[:, 0], axis=0)
    assert out.shape == (B, DIM)
    assert jnp.allclose(out, ref, atol=1e-6, rtol=1e-6)

    # Non-tile-aligned batch: 2 balanced tiles + partial last block,
    # no output padding and no post-hoc slice copy.
    B2 = 777
    x2 = jax.random.randint(jax.random.PRNGKey(1), (B2, 1), 0, VOCAB, jnp.int32)
    out2 = jax.block_until_ready(emb_forward(x2, table_pad))
    ref2 = jnp.take(table, x2[:, 0], axis=0)
    assert out2.shape == (B2, DIM)
    assert jnp.allclose(out2, ref2, atol=1e-6, rtol=1e-6)

    # Tiny batch (< one 8-row tile): exercises the cheap pad + slice fallback.
    B3 = 5
    x3 = jax.random.randint(jax.random.PRNGKey(2), (B3, 1), 0, VOCAB, jnp.int32)
    out3 = jax.block_until_ready(emb_forward(x3, table_pad))
    ref3 = jnp.take(table, x3[:, 0], axis=0)
    assert out3.shape == (B3, DIM)
    assert jnp.allclose(out3, ref3, atol=1e-6, rtol=1e-6)

    print("KERNEL_OK")
</pallas_src>

<mosaic_0001>
module attributes {stable_mosaic.version = 11 : i64} {
  func.func @emb_kernel(%arg0: i32, %arg1: memref<1x8xi32, #tpu.memory_space<vmem>>, %arg2: memref<128x128xf32, #tpu.memory_space<vmem>>, %arg3: memref<8x128xf32, #tpu.memory_space<vmem>>) attributes {dimension_semantics = [#tpu.dimension_semantics<parallel>], iteration_bounds = array<i64: 1>, scalar_prefetch = 0 : i64, scratch_operands = 0 : i64, tpu.core_type = #tpu.core_type<tc>, window_params = [{pipeline_mode = #tpu.pipeline_mode<synchronous>, transform_indices = @transform_0, window_bounds = array<i64: 1, 8>}, {pipeline_mode = #tpu.pipeline_mode<synchronous>, transform_indices = @transform_1, window_bounds = array<i64: 128, 128>}, {transform_indices = @transform_2, window_bounds = array<i64: 8, 128>}]} {
    %0 = arith.index_cast %arg0 : i32 to index
    %c0 = arith.constant 0 : index
    %1 = vector.load %arg1[%0, %c0] : memref<1x8xi32, #tpu.memory_space<vmem>>, vector<1x8xi32>
    %2 = tpu.iota {dimensions = array<i32: 0>} : vector<128x8xi32>
    %3 = vector.broadcast %1 : vector<1x8xi32> to vector<128x8xi32>
    %4 = arith.cmpi eq, %2, %3 : vector<128x8xi32>
    %5 = arith.extui %4 : vector<128x8xi1> to vector<128x8xi32>
    %6 = arith.sitofp %5 : vector<128x8xi32> to vector<128x8xf32>
    %c0_0 = arith.constant 0 : index
    %c0_1 = arith.constant 0 : index
    %7 = vector.load %arg2[%c0_0, %c0_1] : memref<128x128xf32, #tpu.memory_space<vmem>>, vector<128x128xf32>
    %cst = arith.constant dense<0.000000e+00> : vector<8x128xf32>
    %8 = tpu.matmul %6, %7, %cst {dimension_numbers = #tpu.dot_dimension_numbers<[0], [0], [1], [1], [0, 1, 1, 1], [], []>} : vector<128x8xf32>, vector<128x128xf32>, vector<8x128xf32> -> vector<8x128xf32>
    %c0_2 = arith.constant 0 : index
    %c0_3 = arith.constant 0 : index
    %9 = vector.load %arg3[%c0_2, %c0_3] : memref<8x128xf32, #tpu.memory_space<vmem>>, vector<8x128xf32>
    tpu.vector_store %arg3[%c0_2, %c0_3], %8 {strides = array<i32>} : memref<8x128xf32, #tpu.memory_space<vmem>>, vector<8x128xf32>,
    return
  }
  func.func @transform_0(%arg0: i32) -> (i32, i32) {
    %c0_i32 = arith.constant 0 : i32
    %c0_i32_0 = arith.constant 0 : i32
    %c0_i32_1 = arith.constant 0 : i32
    return %c0_i32, %c0_i32_0 : i32, i32
  }
  func.func @transform_1(%arg0: i32) -> (i32, i32) {
    %c0_i32 = arith.constant 0 : i32
    %c0_i32_0 = arith.constant 0 : i32
    %c0_i32_1 = arith.constant 0 : i32
    return %c0_i32, %c0_i32_0 : i32, i32
  }
  func.func @transform_2(%arg0: i32) -> (i32, i32) {
    %c0_i32 = arith.constant 0 : i32
    %c0_i32_0 = arith.constant 0 : i32
    return %arg0, %c0_i32 : i32, i32
  }
}

</mosaic_0001>

<llo_original>
// kernel: emb_forward.1
$region0: #{emb_forward.1}
  #allocation0 [shape = 'u32[]', space=smem, size = 0x4, offset = 0x4, fixed_abs, tag = 'smem constant byte address 0x4 - core index']
  #allocation1 [shape = 'u32[144,128]{1,0:T(1,128)}', space=vmem, size = 0x12000, scoped, tag = 'internal scratch']
  %s0 = inlined_call_operand.vmem [shape: s32[1,8], index: 0, kind: input, shape index: {}]
  %s1 = inlined_call_operand.hbm [shape: f32[128,128], index: 1, kind: input, shape index: {}]
  %s2 = inlined_call_operand.hbm [shape: f32[8,128], index: 2, kind: output, shape index: {}]
  %s3 = sld [smem:[#allocation0]]
  $region22: #{emb_forward.1} parent=0
    _
  %s5 = ssub.s32 1, %s3
  %s6 = scalar_select 0, %s5, %s3
  $region1: #{emb_forward.1} parent=0
    #allocation2 [shape = 'u8[65536]{0}', space=vmem, size = 0x10000, scoped, tag = 'input window, operand 1, single buffered']
    #allocation3 [shape = 's32[1]{0}', space=sflag, size = 0x4, scoped, tag = 'scoped memory for emb_forward.1']
    #allocation4 [shape = 's32[1]{0}', space=sflag, size = 0x4, scoped, tag = 'scoped memory for emb_forward.1']
    #allocation5 [shape = 'u8[4096]{0}', space=vmem, size = 0x1000, scoped, tag = 'output window, operand 0, single buffered']
    %7 = vsyncpa [#allocation3], 0
    %8 = vsyncpa [#allocation4], 0
    // Predicated region
    $region2: #{emb_forward.1} parent=1 // pred_check
      _
    $region3: #{emb_forward.1} parent=1 // pred_check_branch
      %10 = sbr.rel (0) target = $region5
    $region4: #{emb_forward.1} parent=1 // pred_region
      _
    $region5: #{emb_forward.1} parent=1 // pred_fallthru
      _
    // Predicated region
    $region6: #{emb_forward.1} parent=1 // pred_check
      _
    $region7: #{emb_forward.1} parent=1 // pred_check_branch
      %12 = sbr.rel (0) target = $region9
    $region8: #{emb_forward.1} parent=1 // pred_region
      %s14 = ssub.s32 2048, 2048
      %15 = vsyncadd [#allocation3], %s14
      %s16 = sshll.u32 [#allocation2], 4
      %s17 = int_to_ptr.vmem [resolvable:$true] %s16
      %22 = dma.hbm_to_vmem [thread:$0]  %s1, 2048, %s17, [#allocation3], 128, 128, 8
    $region9: #{emb_forward.1} parent=1 // pred_fallthru
      _
    // Predicated region
    $region10: #{emb_forward.1} parent=1 // pred_check
      _
    $region11: #{emb_forward.1} parent=1 // pred_check_branch
      %24 = sbr.rel (0) target = $region13
    $region12: #{emb_forward.1} parent=1 // pred_region
      %25 = dma.done [#allocation3], 2048
    $region13: #{emb_forward.1} parent=1 // pred_fallthru
      _
    %v26 = vld [vmem:[%s0] sm:$0x1]
    %v27 = vlaneseq
    %v28 = vshrl.u32 %v27, 7
    %v29 = vadd.s32 %v28, 8
    %v30 = vadd.s32 %v28, 16
    %v31 = vadd.s32 %v28, 24
    %v32 = vadd.s32 %v28, 32
    %v33 = vadd.s32 %v28, 40
    %v34 = vadd.s32 %v28, 48
    %v35 = vadd.s32 %v28, 56
    %v36 = vadd.s32 %v28, 64
    %v37 = vadd.s32 %v28, 72
    %v38 = vadd.s32 %v28, 80
    %v39 = vadd.s32 %v28, 88
    %v40 = vadd.s32 %v28, 96
    %v41 = vadd.s32 %v28, 104
    %v42 = vadd.s32 %v28, 112
    %v43 = vadd.s32 %v28, 120
    %v44 = vlaneseq
    %v45 = vshrl.u32 %v44, 7
    %v46 = vsub.s32 0, %v45
    %v47 = vrot.slane %v26, %v46
    %vm48 = vcmp.eq.s32.totalorder %v28, %v47
    %vm49 = vcmp.eq.s32.totalorder %v29, %v47
    %vm50 = vcmp.eq.s32.totalorder %v30, %v47
    %vm51 = vcmp.eq.s32.totalorder %v31, %v47
    %vm52 = vcmp.eq.s32.totalorder %v32, %v47
    %vm53 = vcmp.eq.s32.totalorder %v33, %v47
    %vm54 = vcmp.eq.s32.totalorder %v34, %v47
    %vm55 = vcmp.eq.s32.totalorder %v35, %v47
    %vm56 = vcmp.eq.s32.totalorder %v36, %v47
    %vm57 = vcmp.eq.s32.totalorder %v37, %v47
    %vm58 = vcmp.eq.s32.totalorder %v38, %v47
    %vm59 = vcmp.eq.s32.totalorder %v39, %v47
    %vm60 = vcmp.eq.s32.totalorder %v40, %v47
    %vm61 = vcmp.eq.s32.totalorder %v41, %v47
    %vm62 = vcmp.eq.s32.totalorder %v42, %v47
    %vm63 = vcmp.eq.s32.totalorder %v43, %v47
    %v64 = vsel %vm48, 1, 0
    %v65 = vsel %vm49, 1, 0
    %v66 = vsel %vm50, 1, 0
    %v67 = vsel %vm51, 1, 0
    %v68 = vsel %vm52, 1, 0
    %v69 = vsel %vm53, 1, 0
    %v70 = vsel %vm54, 1, 0
    %v71 = vsel %vm55, 1, 0
    %v72 = vsel %vm56, 1, 0
    %v73 = vsel %vm57, 1, 0
    %v74 = vsel %vm58, 1, 0
    %v75 = vsel %vm59, 1, 0
    %v76 = vsel %vm60, 1, 0
    %v77 = vsel %vm61, 1, 0
    %v78 = vsel %vm62, 1, 0
    %v79 = vsel %vm63, 1, 0
    %v80 = vcvt.s32.f32 %v64
    %v81 = vcvt.s32.f32 %v65
    %v82 = vcvt.s32.f32 %v66
    %v83 = vcvt.s32.f32 %v67
    %v84 = vcvt.s32.f32 %v68
    %v85 = vcvt.s32.f32 %v69
    %v86 = vcvt.s32.f32 %v70
    %v87 = vcvt.s32.f32 %v71
    %v88 = vcvt.s32.f32 %v72
    %v89 = vcvt.s32.f32 %v73
    %v90 = vcvt.s32.f32 %v74
    %v91 = vcvt.s32.f32 %v75
    %v92 = vcvt.s32.f32 %v76
    %v93 = vcvt.s32.f32 %v77
    %v94 = vcvt.s32.f32 %v78
    %v95 = vcvt.s32.f32 %v79
    %v96 = vld [vmem:[#allocation2] sm:$0xff]
    %v97 = vld [vmem:[#allocation2 + $0x8] sm:$0xff]
    %v98 = vld [vmem:[#allocation2 + $0x10] sm:$0xff]
    %v99 = vld [vmem:[#allocation2 + $0x18] sm:$0xff]
    %v100 = vld [vmem:[#allocation2 + $0x20] sm:$0xff]
    %v101 = vld [vmem:[#allocation2 + $0x28] sm:$0xff]
    %v102 = vld [vmem:[#allocation2 + $0x30] sm:$0xff]
    %v103 = vld [vmem:[#allocation2 + $0x38] sm:$0xff]
    %v104 = vld [vmem:[#allocation2 + $0x40] sm:$0xff]
    %v105 = vld [vmem:[#allocation2 + $0x48] sm:$0xff]
    %v106 = vld [vmem:[#allocation2 + $0x50] sm:$0xff]
    %v107 = vld [vmem:[#allocation2 + $0x58] sm:$0xff]
    %v108 = vld [vmem:[#allocation2 + $0x60] sm:$0xff]
    %v109 = vld [vmem:[#allocation2 + $0x68] sm:$0xff]
    %v110 = vld [vmem:[#allocation2 + $0x70] sm:$0xff]
    %v111 = vld [vmem:[#allocation2 + $0x78] sm:$0xff]
    %112 = vxpose.xlu0.b32.start [1/16] %v80, 128
    %113 = vxpose.xlu0.b32.cont [2/16] %v81, 128
    %114 = vxpose.xlu0.b32.cont [3/16] %v82, 128
    %115 = vxpose.xlu0.b32.cont [4/16] %v83, 128
    %116 = vxpose.xlu0.b32.cont [5/16] %v84, 128
    %117 = vxpose.xlu0.b32.cont [6/16] %v85, 128
    %118 = vxpose.xlu0.b32.cont [7/16] %v86, 128
    %119 = vxpose.xlu0.b32.cont [8/16] %v87, 128
    %120 = vxpose.xlu0.b32.cont [9/16] %v88, 128
    %121 = vxpose.xlu0.b32.cont [10/16] %v89, 128
    %122 = vxpose.xlu0.b32.cont [11/16] %v90, 128
    %123 = vxpose.xlu0.b32.cont [12/16] %v91, 128
    %124 = vxpose.xlu0.b32.cont [13/16] %v92, 128
    %125 = vxpose.xlu0.b32.cont [14/16] %v93, 128
    %126 = vxpose.xlu0.b32.cont [15/16] %v94, 128
    %127 = vxpose.xlu0.b32.end [16/16] %v95, 128
    %v128 = vpop.trf.xlu0
    %v129 = vpop.trf.xlu0
    %v130 = vpop.trf.xlu0
    %v131 = vpop.trf.xlu0
    %v132 = vpop.trf.xlu0
    %v133 = vpop.trf.xlu0
    %v134 = vpop.trf.xlu0
    %v135 = vpop.trf.xlu0
    %v136 = vpop.trf.xlu0
    %v137 = vpop.trf.xlu0
    %v138 = vpop.trf.xlu0
    %v139 = vpop.trf.xlu0
    %v140 = vpop.trf.xlu0
    %v141 = vpop.trf.xlu0
    %v142 = vpop.trf.xlu0
    %v143 = vpop.trf.xlu0
    %144 = vmatprep.subr.mxu0 0.0
    %145 = vmatpush1.msra.mxu0 %v96
    %146 = vmatprep.subr.mxu0 0.0
    %147 = vmatpush1.msra.mxu0 %v97
    %148 = vmatprep.subr.mxu0 0.0
    %149 = vmatpush1.msra.mxu0 %v98
    %150 = vmatprep.subr.mxu0 0.0
    %151 = vmatpush1.msra.mxu0 %v99
    %152 = vmatprep.subr.mxu0 0.0
    %153 = vmatpush1.msra.mxu0 %v100
    %154 = vmatprep.subr.mxu0 0.0
    %155 = vmatpush1.msra.mxu0 %v101
    %156 = vmatprep.subr.mxu0 0.0
    %157 = vmatpush1.msra.mxu0 %v102
    %158 = vmatprep.subr.mxu0 0.0
    %159 = vmatpush1.msra.mxu0 %v103
    %160 = vmatprep.subr.mxu0 0.0
    %161 = vmatpush1.msra.mxu0 %v104
    %162 = vmatprep.subr.mxu0 0.0
    %163 = vmatpush1.msra.mxu0 %v105
    %164 = vmatprep.subr.mxu0 0.0
    %165 = vmatpush1.msra.mxu0 %v106
    %166 = vmatprep.subr.mxu0 0.0
    %167 = vmatpush1.msra.mxu0 %v107
    %168 = vmatprep.subr.mxu0 0.0
    %169 = vmatpush1.msra.mxu0 %v108
    %170 = vmatprep.subr.mxu0 0.0
    %171 = vmatpush1.msra.mxu0 %v109
    %172 = vmatprep.subr.mxu0 0.0
    %173 = vmatpush1.msra.mxu0 %v110
    %174 = vmatprep.subr.mxu0 0.0
    %175 = vmatpush1.msra.mxu0 %v111
    %176 = vmatprep.subr.mxu0 0.0
    %177 = vmatpush1.msra.mxu0 0.0
    %178 = vmatprep.subr.mxu0 0.0
    %179 = vmatpush1.msra.mxu0 0.0
    %180 = vmatprep.subr.mxu0 0.0
    %181 = vmatpush1.msra.mxu0 0.0
    %182 = vmatprep.subr.mxu0 0.0
    %183 = vmatpush1.msra.mxu0 0.0
    %184 = vmatprep.subr.mxu0 0.0
    %185 = vmatpush1.msra.mxu0 0.0
    %186 = vmatprep.subr.mxu0 0.0
    %187 = vmatpush1.msra.mxu0 0.0
    %188 = vmatprep.subr.mxu0 0.0
    %189 = vmatpush1.msra.mxu0 0.0
    %190 = vmatprep.subr.mxu0 0.0
    %191 = vmatpush1.msra.mxu0 0.0
    %192 = vmatprep.subr.mxu0 0.0
    %193 = vmatpush1.msra.mxu0 0.0
    %194 = vmatprep.subr.mxu0 0.0
    %195 = vmatpush1.msra.mxu0 0.0
    %196 = vmatprep.subr.mxu0 0.0
    %197 = vmatpush1.msra.mxu0 0.0
    %198 = vmatprep.subr.mxu0 0.0
    %199 = vmatpush1.msra.mxu0 0.0
    %200 = vmatprep.subr.mxu0 0.0
    %201 = vmatpush1.msra.mxu0 0.0
    %202 = vmatprep.subr.mxu0 0.0
    %203 = vmatpush1.msra.mxu0 0.0
    %204 = vmatprep.subr.mxu0 0.0
    %205 = vmatpush1.msra.mxu0 0.0
    %206 = vmatprep.subr.mxu0 0.0
    %207 = vmatpush1.msra.mxu0 0.0
    %208 = vmatprep.mubr.f32.mxu0 0.0
    %209 = vmatmul.mubr.f32.gmra.mrb[0].mxu0 %v128
    %v210 = vpop.f32.mrb[0].mxu0
    %v211 = vadd.f32 0.0, %v210
    %v212 = vpop.f32.mrb[0].mxu0
    %213 = vdwg.mxu0
    %214 = vst [vmem:[#allocation5] sm:$0xff] %v211
    // Predicated region
    $region14: #{emb_forward.1} parent=1 // pred_check
      _
    $region15: #{emb_forward.1} parent=1 // pred_check_branch
      %216 = sbr.rel (0) target = $region17
    $region16: #{emb_forward.1} parent=1 // pred_region
      %s218 = ssub.s32 128, 128
      %219 = vsyncadd [#allocation4], %s218
      %s221 = sshll.u32 [#allocation5], 4
      %s222 = int_to_ptr.vmem [resolvable:$true] %s221
      %224 = dma.vmem_to_hbm [thread:$0]  %s222, 128, %s2, [#allocation4]
    $region17: #{emb_forward.1} parent=1 // pred_fallthru
      _
    // Predicated region
    $region18: #{emb_forward.1} parent=1 // pred_check
      _
    $region19: #{emb_forward.1} parent=1 // pred_check_branch
      %226 = sbr.rel (0) target = $region21
    $region20: #{emb_forward.1} parent=1 // pred_region
      %227 = dma.done [#allocation4], 128
    $region21: #{emb_forward.1} parent=1 // pred_fallthru
      _
    %228 = vsyncpa [#allocation3], 1
    %229 = vsyncpa [#allocation4], 1

</llo_original>
